<compile_context>
chip_gen: v7x
topology: tpu7x:2x2x1
jax: 0.10.0
libtpu: 0.0.40
codegen_flags: <defaults>
</compile_context>

<pallas_src>
import math

import jax
import jax.numpy as jnp
from jax.experimental import pallas as pl
from jax.experimental.pallas import tpu as pltpu


def _round_up(x, m):
    return ((x + m - 1) // m) * m


def _onehot_kernel(lab_ref, out_ref):
    # lab_ref: (TB, 1, TR) int32 labels (spatial lane-packed)
    # out_ref: (TB, C, TR)  one-hot tile: class axis on sublanes, spatial on lanes
    tb, c, tr = out_ref.shape
    class_ids = jax.lax.broadcasted_iota(jnp.int32, (tb, c, tr), 1)
    out_ref[...] = (lab_ref[...] == class_ids).astype(out_ref.dtype)


def one_hot_encoder(t, n_classes, *, out_dtype=jnp.float32,
                    vmem_budget_bytes=20 * 1024 * 1024):
    """Pallas equivalent of OneHotEncoder(n_classes).forward(t).

    Returns one-hot of dtype `out_dtype` (default float32, matching PyTorch),
    shape (B, n_classes, d1, ..., d_{n-1}).
    Out-of-range / negative labels yield an all-zero class column (same as
    jax.nn.one_hot; torch.nn.functional.one_hot would raise instead).
    """
    t = jnp.asarray(t)
    in_shape = t.shape
    b = in_shape[0]
    spatial = tuple(in_shape[1:])
    r = int(math.prod(spatial)) if spatial else 1

    # Lane-packed labels; the reshape is layout-free.
    labels = t.astype(jnp.int32).reshape(b, 1, r)

    itemsize = jnp.dtype(out_dtype).itemsize
    sublane_pack = 32 // itemsize                 # 8 (f32) / 16 (bf16) / 32 (int8)
    padded_c = _round_up(n_classes, sublane_pack)

    # Padded VMEM bytes per lane-column: the out block uses padded_c sublanes,
    # and the int32 label block's single row pads to 8 sublanes in VMEM (HBM
    # traffic for labels is still just 4 B/lane). Double-buffering doubles both.
    per_lane_padded = padded_c * itemsize + 8 * 4
    max_lanes = max(128, vmem_budget_bytes // (2 * per_lane_padded))

    r128 = _round_up(r, 128)
    tile_r = min(r128, max(128, (max_lanes // 128) * 128))
    tile_b = max(1, min(b, max_lanes // tile_r))

    nb, nr = pl.cdiv(b, tile_b), pl.cdiv(r, tile_r)
    # Keep >= 2 blocks when possible so both v7x TensorCores get work even for
    # inputs that would otherwise fit a single block.
    if nb * nr == 1:
        if tile_b > 1:
            tile_b = (tile_b + 1) // 2
        elif tile_r > 128:
            tile_r = max(128, _round_up(tile_r // 2, 128))
        nb, nr = pl.cdiv(b, tile_b), pl.cdiv(r, tile_r)

    # Explicit scoped-VMEM limit from the padded, double-buffered footprint
    # (+ headroom); <= 24 MiB by construction, safe on v5e/v6e/v7x.
    vmem_need = 2 * tile_b * tile_r * per_lane_padded
    vmem_limit = int(min(30 << 20, max(8 << 20, vmem_need + (4 << 20))))

    out_bytes = b * n_classes * r * itemsize
    lab_bytes = b * r * 4
    cost = pl.CostEstimate(flops=b * n_classes * r, transcendentals=0,
                           bytes_accessed=out_bytes + lab_bytes)

    out = pl.pallas_call(
        _onehot_kernel,
        out_shape=jax.ShapeDtypeStruct((b, n_classes, r), out_dtype),
        grid_spec=pltpu.PrefetchScalarGridSpec(
            num_scalar_prefetch=0,
            grid=(nb, nr),
            in_specs=[pl.BlockSpec((tile_b, 1, tile_r),
                                   lambda bi, ri: (bi, 0, ri))],
            out_specs=pl.BlockSpec((tile_b, n_classes, tile_r),
                                   lambda bi, ri: (bi, 0, ri)),
        ),
        compiler_params=pltpu.CompilerParams(
            dimension_semantics=("parallel", "parallel"),
            vmem_limit_bytes=vmem_limit),
        cost_estimate=cost,
    )(labels)

    # Free reshape: (B, C, R) row-major == (B, C, d1, ..., d_{n-1}) row-major.
    return out.reshape((b, n_classes) + spatial)


def _reference(t, n_classes):
    """Pure-JAX reference matching the PyTorch module."""
    t = jnp.asarray(t).astype(jnp.int32)
    n_dim = t.ndim
    oh = jax.nn.one_hot(t, n_classes, dtype=jnp.float32)          # (..., C)
    perm = (0, n_dim) + tuple(range(1, n_dim))
    return jnp.transpose(oh, perm)


if __name__ == "__main__":
    key = jax.random.PRNGKey(0)
    n_classes = 10

    # Main case: segmentation-style label map (B, H, W) with H*W % 128 == 0.
    B, H, W = 2, 16, 16
    t = jax.random.randint(key, (B, H, W), 0, n_classes, dtype=jnp.int32)
    out = jax.block_until_ready(one_hot_encoder(t, n_classes))
    ref = _reference(t, n_classes)
    assert out.shape == (B, n_classes, H, W), out.shape
    assert out.dtype == jnp.float32
    assert jnp.array_equal(out, ref), "mismatch vs reference (divisible case)"

    # Ragged case: spatial size not a multiple of 128 (masked edge-lane writes).
    t2 = jax.random.randint(jax.random.PRNGKey(0), (2, 7, 9), 0, n_classes,
                            dtype=jnp.int32)
    out2 = jax.block_until_ready(one_hot_encoder(t2, n_classes))
    ref2 = _reference(t2, n_classes)
    assert out2.shape == (2, n_classes, 7, 9), out2.shape
    assert jnp.array_equal(out2, ref2), "mismatch vs reference (ragged lanes)"

    # Edge blocks on BOTH axes: odd batch with batch-blocking + partial lanes.
    t3 = jax.random.randint(jax.random.PRNGKey(1), (3, 13, 10), 0, n_classes,
                            dtype=jnp.int32)
    out3 = jax.block_until_ready(one_hot_encoder(t3, n_classes))
    ref3 = _reference(t3, n_classes)
    assert out3.shape == (3, n_classes, 13, 10), out3.shape
    assert jnp.array_equal(out3, ref3), "mismatch vs reference (edge blocks)"

    print("KERNEL_OK")
</pallas_src>

<mosaic_0001>
module attributes {stable_mosaic.version = 11 : i64} {
  func.func @_onehot_kernel(%arg0: i32, %arg1: i32, %arg2: memref<1x1x256xi32, #tpu.memory_space<vmem>>, %arg3: memref<1x10x256xf32, #tpu.memory_space<vmem>>) attributes {dimension_semantics = [#tpu.dimension_semantics<parallel>, #tpu.dimension_semantics<parallel>], iteration_bounds = array<i64: 2, 1>, scalar_prefetch = 0 : i64, scratch_operands = 0 : i64, tpu.core_type = #tpu.core_type<tc>, window_params = [{transform_indices = @transform_0, window_bounds = array<i64: 1, 1, 256>}, {transform_indices = @transform_1, window_bounds = array<i64: 1, 10, 256>}]} {
    %0 = tpu.iota {dimensions = array<i32: 1>} : vector<1x10x256xi32>
    %c0 = arith.constant 0 : index
    %c0_0 = arith.constant 0 : index
    %c0_1 = arith.constant 0 : index
    %1 = vector.load %arg2[%c0, %c0_0, %c0_1] : memref<1x1x256xi32, #tpu.memory_space<vmem>>, vector<1x1x256xi32>
    %2 = vector.broadcast %1 : vector<1x1x256xi32> to vector<1x10x256xi32>
    %3 = arith.cmpi eq, %2, %0 : vector<1x10x256xi32>
    %4 = arith.extui %3 : vector<1x10x256xi1> to vector<1x10x256xi32>
    %5 = arith.sitofp %4 : vector<1x10x256xi32> to vector<1x10x256xf32>
    %c0_2 = arith.constant 0 : index
    %c0_3 = arith.constant 0 : index
    %c0_4 = arith.constant 0 : index
    %6 = vector.load %arg3[%c0_2, %c0_3, %c0_4] : memref<1x10x256xf32, #tpu.memory_space<vmem>>, vector<1x10x256xf32>
    tpu.vector_store %arg3[%c0_2, %c0_3, %c0_4], %5 {strides = array<i32>} : memref<1x10x256xf32, #tpu.memory_space<vmem>>, vector<1x10x256xf32>,
    return
  }
  func.func @transform_0(%arg0: i32, %arg1: i32) -> (i32, i32, i32) {
    %c0_i32 = arith.constant 0 : i32
    %c0_i32_0 = arith.constant 0 : i32
    return %arg0, %c0_i32, %arg1 : i32, i32, i32
  }
  func.func @transform_1(%arg0: i32, %arg1: i32) -> (i32, i32, i32) {
    %c0_i32 = arith.constant 0 : i32
    %c0_i32_0 = arith.constant 0 : i32
    return %arg0, %c0_i32, %arg1 : i32, i32, i32
  }
}

</mosaic_0001>

<llo_original>
// kernel: tpu_custom_call.1
$region0: #{tpu_custom_call.1}
  #allocation0 [shape = 'u32[]', space=smem, size = 0x4, offset = 0x4, fixed_abs, tag = 'smem constant byte address 0x4 - core index']
  #allocation1 [shape = 'u32[144,128]{1,0:T(1,128)}', space=vmem, size = 0x12000, scoped, tag = 'internal scratch']
  %s0 = inlined_call_operand.hbm [shape: s32[2,1,256], index: 0, kind: input, shape index: {}]
  %s1 = inlined_call_operand.vmem [shape: f32[2,10,256], index: 1, kind: output, shape index: {}]
  %s2 = sld [smem:[#allocation0]]
  $region41: #{tpu_custom_call.1} parent=0
    _
  %s4 = ssub.s32 1, %s2
  %s5 = scalar_select 0, %s4, %s2
  $region1: #{tpu_custom_call.1} parent=0
    #allocation2 [shape = 'u8[2048]{0}', space=vmem, size = 0x800, scoped, tag = 'input window, operand 0']
    #allocation3 [shape = 's32[2]{0}', space=sflag, size = 0x8, scoped, tag = 'scoped memory for tpu_custom_call.1']
    %6 = vsyncpa [#allocation3], 0
    %s7 = scalar_lea.sflag [#allocation3], 1
    %8 = vsyncpa %s7, 0
    loop: start=0, step=1, limit=4
    $region2: #{tpu_custom_call.1} parent=1 // loop_pre_header
      _
    $region3: #{tpu_custom_call.1} parent=1 // loop_header
      %s10 = sphi 0, %s14
      %p11 = scmp.ge.s32.totalorder %s10, 4
      %s17 = sphi 0, %s29
      %s18 = sphi 0, %s25
      %s19 = sphi 0, %s17
      %s20 = sphi 0, %s18
      %s21 = sphi 0, %s19
      %s22 = sphi 0, %s20
      %s34 = sphi 0, %s36
      %s37 = sphi 0, %s34
      %s38 = sphi 0, %s37
      %s54 = sphi 0, %s38
      %s62 = sphi 0, %s64
      %s65 = sphi 0, %s62
      %s66 = sphi 0, %s65
      %s82 = sphi 0, %s66
    $region4: #{tpu_custom_call.1} parent=1 // loop_header_branch
      %13 = sbr.rel (%p11) target = $region8
    $region5: #{tpu_custom_call.1} parent=1 // loop_body
      %s15 = ssub.s32 %s10, 1
      %s16 = ssub.s32 %s10, 2
      %s23 = sadd.s32 1, %s18
      %p24 = scmp.ge.s32.totalorder %s23, 1
      %s25 = scalar_select %p24, 0, %s23
      %s26 = sadd.s32 1, %s17
      %s27 = scalar_select %p24, %s26, %s17
      %p28 = scmp.ge.s32.totalorder %s27, 2
      %s29 = scalar_select %p28, 0, %s27
      %s30 = ssub.s32 %s17, %s29
      %s31 = ssub.s32 %s18, %s25
      %s32 = sor.u32 %s30, %s31
      %p33 = scmp.eq.s32.totalorder %s32, 0
      %s35 = sadd.s32 %s34, 1
      %s36 = scalar_select %p33, %s34, %s35
      %p39 = pneg %p33
      %p40 = scmp.eq.s32.totalorder %s10, 1
      %p41 = por %p39, %p40
      %p42 = scmp.ne.s32.totalorder %s34, %s37
      %p43 = scmp.eq.s32.totalorder %s10, 0
      %p44 = por %p42, %p43
      %p45 = scmp.ne.s32.totalorder %s34, %s37
      %p46 = scmp.eq.s32.totalorder %s15, 1
      %p47 = por %p45, %p46
      %p48 = scmp.ne.s32.totalorder %s37, %s38
      %p49 = scmp.eq.s32.totalorder %s15, 0
      %p50 = por %p48, %p49
      %p51 = scmp.ne.s32.totalorder %s37, %s38
      %p52 = scmp.eq.s32.totalorder %s16, 1
      %p53 = por %p51, %p52
      %p55 = scmp.ne.s32.totalorder %s38, %s54
      %p56 = scmp.eq.s32.totalorder %s16, 0
      %p57 = por %p55, %p56
      %s58 = ssub.s32 %s17, %s29
      %s59 = ssub.s32 %s18, %s25
      %s60 = sor.u32 %s58, %s59
      %p61 = scmp.eq.s32.totalorder %s60, 0
      %s63 = sadd.s32 %s62, 1
      %s64 = scalar_select %p61, %s62, %s63
      %p67 = pneg %p61
      %p68 = scmp.eq.s32.totalorder %s10, 1
      %p69 = por %p67, %p68
      %p70 = scmp.ne.s32.totalorder %s62, %s65
      %p71 = scmp.eq.s32.totalorder %s10, 0
      %p72 = por %p70, %p71
      %p73 = scmp.ne.s32.totalorder %s62, %s65
      %p74 = scmp.eq.s32.totalorder %s15, 1
      %p75 = por %p73, %p74
      %p76 = scmp.ne.s32.totalorder %s65, %s66
      %p77 = scmp.eq.s32.totalorder %s15, 0
      %p78 = por %p76, %p77
      %p79 = scmp.ne.s32.totalorder %s65, %s66
      %p80 = scmp.eq.s32.totalorder %s16, 1
      %p81 = por %p79, %p80
      %p83 = scmp.ne.s32.totalorder %s66, %s82
      %p84 = scmp.eq.s32.totalorder %s16, 0
      %p85 = por %p83, %p84
      %p86 = scmp.le.s32.totalorder 1, %s10
      %p87 = scmp.lt.s32.totalorder %s10, 3
      %p88 = pnand %p86, %p87
      %p89 = pneg %p88
      // Predicated region
      $region9: #{tpu_custom_call.1} parent=5 // pred_check
        _
      $region10: #{tpu_custom_call.1} parent=5 // pred_check_branch
        %91 = sbr.rel (%p88) target = $region12
      $region11: #{tpu_custom_call.1} parent=5 // pred_region
        %s92 = ssub.s32 %s10, 1
      $region12: #{tpu_custom_call.1} parent=5 // pred_fallthru
        _
      %p93 = scmp.lt.s32.totalorder %s10, 2
      // Predicated region
      $region13: #{tpu_custom_call.1} parent=5 // pred_check
        %p94 = pneg %p93
      $region14: #{tpu_custom_call.1} parent=5 // pred_check_branch
        %96 = sbr.rel (%p94) target = $region16
      $region15: #{tpu_custom_call.1} parent=5 // pred_region
        // Predicated region
        $region17: #{tpu_custom_call.1} parent=15 // pred_check
          %p97 = pneg %p44
        $region18: #{tpu_custom_call.1} parent=15 // pred_check_branch
          %99 = sbr.rel (%p97) target = $region20
        $region19: #{tpu_custom_call.1} parent=15 // pred_region
          %s100 = sand.u32 %s34, 1
          %s101 = scalar_lea.sflag [#allocation3], %s100
          %s102 = sand.u32 %s34, 1
          %s103 = smul.addr %s102, 2
          %s104 = scalar_lea.vmem [#allocation2], %s103
          %s105 = smul.u32 2, %s18
          %s107 = ssub.s32 32, 32
          %108 = vsyncadd %s101, %s107
          %s109 = smul.addr %s17, 2
          %s110 = sadd.s32 %s105, %s109
          %s111 = smul.addr %s110, 16
          %s112 = scalar_lea.hbm %s0, %s111
          %s114 = sshll.u32 %s104, 4
          %s115 = int_to_ptr.vmem [resolvable:$true] %s114
          %117 = dma.hbm_to_vmem [thread:$0]  %s112, 32, %s115, %s101
        $region20: #{tpu_custom_call.1} parent=15 // pred_fallthru
          _
      $region16: #{tpu_custom_call.1} parent=5 // pred_fallthru
        _
      %p118 = scmp.le.s32.totalorder 1, %s10
      %p119 = scmp.lt.s32.totalorder %s10, 3
      %p120 = pnand %p118, %p119
      %p121 = pneg %p120
      // Predicated region
      $region21: #{tpu_custom_call.1} parent=5 // pred_check
        _
      $region22: #{tpu_custom_call.1} parent=5 // pred_check_branch
        %123 = sbr.rel (%p120) target = $region24
      $region23: #{tpu_custom_call.1} parent=5 // pred_region
        %s124 = ssub.s32 %s10, 1
        %s125 = sand.u32 %s37, 1
        %s126 = scalar_lea.sflag [#allocation3], %s125
        %s127 = sand.u32 %s37, 1
        %s128 = smul.addr %s127, 2
        %s129 = scalar_lea.vmem [#allocation2], %s128
        // Predicated region
        $region25: #{tpu_custom_call.1} parent=23 // pred_check
          %p130 = pneg %p50
        $region26: #{tpu_custom_call.1} parent=23 // pred_check_branch
          %132 = sbr.rel (%p130) target = $region28
        $region27: #{tpu_custom_call.1} parent=23 // pred_region
          %133 = dma.done %s126, 32
        $region28: #{tpu_custom_call.1} parent=23 // pred_fallthru
          _
        %s134 = sand.u32 %s37, 1
        %s135 = scalar_lea.sflag [#allocation3], %s134
        %s136 = sand.u32 %s37, 1
        %s137 = smul.addr %s136, 2
        %s138 = scalar_lea.vmem [#allocation2], %s137
        %p139 = pneg %p50
        %p140 = pneg %p47
        %p141 = pneg %p78
        %p142 = pneg %p75
        %s143 = smul.u32 2, %s20
        %p144 = scmp.lt.s32.totalorder %s19, 1
        %s145 = scalar_select %p144, %s19, 1
        %p146 = scmp.lt.s32.totalorder %s143, 1
        %s147 = scalar_select %p146, %s143, 1
        %s148 = smul.addr %s145, 4
        %s149 = sadd.s32 %s147, %s148
        %s150 = smul.addr %s149, 8
        %s151 = scalar_lea.vmem %s1, %s150
        %s152 = smul.u32 2, %s20
        %s153 = smul.u32 2, %s20
        %p154 = scmp.lt.s32.totalorder %s19, 1
        %s155 = scalar_select %p154, %s19, 1
        %p156 = scmp.lt.s32.totalorder %s153, 1
        %s157 = scalar_select %p156, %s153, 1
        %s158 = smul.addr %s155, 4
        %s159 = sadd.s32 %s157, %s158
        %s160 = smul.addr %s159, 8
        %s161 = scalar_lea.vmem %s1, %s160
        %s162 = smul.u32 2, %s20
        %v163 = vlaneseq
        %v164 = vshrl.u32 %v163, 7
        %v165 = vadd.s32 %v164, 8
        %v166 = vld [vmem:[%s129] sm:$0x3]
        %v167 = vlaneseq
        %v168 = vshrl.u32 %v167, 7
        %v169 = vsub.s32 0, %v168
        %v170 = vrot.slane %v166, %v169
        %v171 = vlaneseq
        %v172 = vshrl.u32 %v171, 7
        %v173 = vsub.s32 1, %v172
        %v174 = vrot.slane %v166, %v173
        %vm175 = vcmp.eq.s32.totalorder %v170, %v164
        %vm176 = vcmp.eq.s32.totalorder %v174, %v164
        %vm177 = vcmp.eq.s32.totalorder %v170, %v165
        %vm178 = vcmp.eq.s32.totalorder %v174, %v165
        %v179 = vsel %vm175, 1, 0
        %v180 = vsel %vm176, 1, 0
        %v181 = vsel %vm177, 1, 0
        %v182 = vsel %vm178, 1, 0
        %v183 = vcvt.s32.f32 %v179
        %v184 = vcvt.s32.f32 %v180
        %v185 = vcvt.s32.f32 %v181
        %v186 = vcvt.s32.f32 %v182
        %187 = vst [vmem:[%s161] sm:$0xff] %v183
        %188 = vst [vmem:[%s161 + $0x8] sm:$0xff] %v184
        %189 = vst [vmem:[%s161 + $0x10] sm:$0x3] %v185
        %190 = vst [vmem:[%s161 + $0x18] sm:$0x3] %v186
        %s191 = smul.u32 2, %s20
        %p192 = scmp.lt.s32.totalorder %s19, 1
        %s193 = scalar_select %p192, %s19, 1
        %p194 = scmp.lt.s32.totalorder %s191, 1
        %s195 = scalar_select %p194, %s191, 1
        %s196 = smul.addr %s193, 4
        %s197 = sadd.s32 %s195, %s196
        %s198 = smul.addr %s197, 8
        %s199 = scalar_lea.vmem %s1, %s198
        // Predicated region
        $region29: #{tpu_custom_call.1} parent=23 // pred_check
          %p200 = pneg %p75
        $region30: #{tpu_custom_call.1} parent=23 // pred_check_branch
          %202 = sbr.rel (%p200) target = $region32
        $region31: #{tpu_custom_call.1} parent=23 // pred_region
          %s203 = smul.u32 2, %s20
        $region32: #{tpu_custom_call.1} parent=23 // pred_fallthru
          _
      $region24: #{tpu_custom_call.1} parent=5 // pred_fallthru
        _
      %p204 = scmp.le.s32.totalorder 2, %s10
      // Predicated region
      $region33: #{tpu_custom_call.1} parent=5 // pred_check
        %p205 = pneg %p204
      $region34: #{tpu_custom_call.1} parent=5 // pred_check_branch
        %207 = sbr.rel (%p205) target = $region36
      $region35: #{tpu_custom_call.1} parent=5 // pred_region
        %s208 = ssub.s32 %s10, 2
        // Predicated region
        $region37: #{tpu_custom_call.1} parent=35 // pred_check
          %p209 = pneg %p81
        $region38: #{tpu_custom_call.1} parent=35 // pred_check_branch
          %211 = sbr.rel (%p209) target = $region40
        $region39: #{tpu_custom_call.1} parent=35 // pred_region
          %s212 = smul.u32 2, %s22
          %p213 = scmp.lt.s32.totalorder %s21, 1
          %s214 = scalar_select %p213, %s21, 1
          %p215 = scmp.lt.s32.totalorder %s212, 1
          %s216 = scalar_select %p215, %s212, 1
          %s217 = smul.addr %s214, 4
          %s218 = sadd.s32 %s216, %s217
          %s219 = smul.addr %s218, 8
          %s220 = scalar_lea.vmem %s1, %s219
        $region40: #{tpu_custom_call.1} parent=35 // pred_fallthru
          _
      $region36: #{tpu_custom_call.1} parent=5 // pred_fallthru
        _
    $region6: #{tpu_custom_call.1} parent=1 // loop_footer
      %s14 = sadd.s32 1, %s10
    $region7: #{tpu_custom_call.1} parent=1 // loop_footer_branch
      %9 = sbr.rel target = $region3
    $region8: #{tpu_custom_call.1} parent=1 // loop_exit
      _
    %221 = vsyncpa [#allocation3], 1
    %s222 = scalar_lea.sflag [#allocation3], 1
    %223 = vsyncpa %s222, 1

</llo_original>
